<compile_context>
chip_gen: v5e
topology: v5e:2x2
jax: 0.10.0
libtpu: 0.0.40
codegen_flags: <defaults>
</compile_context>

<pallas_src>
import jax
import jax.numpy as jnp
from jax.experimental import pallas as pl
from jax.experimental.pallas import tpu as pltpu

N = 2
H = W = 9                               # input spatial (so last dim after 2 convs == 5)
C1, K1 = 4, 3                           # conv1: Conv2d(1, 4, 3)
C2, K2 = 9, 3                           # conv2: Conv2d(4, 9, 3)
H1, W1 = H - K1 + 1, W - K1 + 1         # 7, 7
H2, W2 = H1 - K2 + 1, W1 - K2 + 1       # 5, 5
LIN_IN, LIN_OUT = 5, 4                  # Linear(5, 4)
RF = K1 + K2 - 1                        # 5 = combined conv1+conv2 receptive field
NPOS = W2 * N * H2                      # 50 = number of conv2 output positions
NOUT = N * H2 * LIN_OUT                 # 40 = output columns per conv2 channel


def model_kernel(pt_ref, w1_ref, b1_ref, w2_ref, b2_ref, bd_ref, bl_ref, o_ref):
    # pt : (25, 50)  input patches, rows=(a,b), cols=(j2, n, i2)
    # w1 : (36, 25)  conv1 weights lifted to the 5x5 combined receptive field
    # w2 : (9, 36)   conv2 weights, cols ordered (di, dj, c1)
    # bd : (50, 40)  block-diagonal Linear(5,4) weights (contracts the j2 axis)
    pt = pt_ref[...]

    # conv1 + ReLU (one MXU matmul, vector bias add)
    h1 = jnp.dot(w1_ref[...], pt, preferred_element_type=jnp.float32) + b1_ref[...]
    h1 = jnp.maximum(h1, 0.0)                                   # (36, 50)

    # conv2 + ReLU (one MXU matmul)
    h2 = jnp.dot(w2_ref[...], h1, preferred_element_type=jnp.float32) + b2_ref[...]
    h2 = jnp.maximum(h2, 0.0)                                   # (9, 50)

    # one batched sigmoid (single EUP exp over the whole tile)
    s = 1.0 / (1.0 + jnp.exp(-h2))                              # (9, 50)

    # Sequential(Sigmoid(), Linear(5,4)) as one matmul + one lane-dense store
    o_ref[...] = (jnp.dot(s, bd_ref[...], preferred_element_type=jnp.float32)
                  + bl_ref[...])                                # (9, 40)


def _prep_operands(x_nchw, w1, b1, w2, b2, wl, bl):
    """Layout plumbing only: im2col of the input + structured weight matrices."""
    xs = x_nchw[:, 0]                                           # (N, H, W), Cin == 1

    # PT[a*RF+b, j2*(N*H2) + n*H2 + i2] = x[n, i2+a, j2+b]
    pt = jnp.stack(
        [jnp.stack([xs[:, a:a + H2, b:b + W2] for b in range(RF)], axis=0)
         for a in range(RF)], axis=0)                           # (RF, RF, N, H2, W2)
    PT = pt.transpose(0, 1, 4, 2, 3).reshape(RF * RF, NPOS)     # (25, 50)

    # conv1 weights placed at every conv2 tap inside the 5x5 field.
    # Row q = (di*3 + dj)*C1 + c1 ;  W1T[q, a*5+b] = w1[c1, 0, a-di, b-dj]
    blocks = []
    for di in range(K2):
        for dj in range(K2):
            blk = jnp.zeros((C1, RF, RF), jnp.float32)
            blk = blk.at[:, di:di + K1, dj:dj + K1].set(w1[:, 0])
            blocks.append(blk.reshape(C1, RF * RF))
    W1T = jnp.concatenate(blocks, axis=0)                       # (36, 25)
    B1 = jnp.tile(b1, K2 * K2).reshape(K2 * K2 * C1, 1)         # (36, 1)

    # conv2 weights: W2T[c2, (di*3+dj)*C1 + c1] = w2[c2, c1, di, dj]
    W2T = w2.transpose(0, 2, 3, 1).reshape(C2, K2 * K2 * C1)    # (9, 36)
    B2 = b2.reshape(C2, 1)                                      # (9, 1)

    # Block-diagonal Linear: BD[j2*(N*H2)+r, r*LIN_OUT+o] = wl[o, j2]
    eye = jnp.eye(N * H2, dtype=jnp.float32)                    # (10, 10)
    BD = (wl.T[:, None, None, :] * eye[None, :, :, None]).reshape(NPOS, NOUT)  # (50, 40)
    BL = jnp.tile(bl, N * H2).reshape(1, NOUT)                  # (1, 40)

    return PT, W1T, B1, W2T, B2, BD, BL


@jax.jit
def model_forward(x_nchw, w1, b1, w2, b2, wl, bl):
    """x_nchw: (N, 1, H, W) f32. Returns (N, C2, H2, LIN_OUT) like PyTorch."""
    PT, W1T, B1, W2T, B2, BD, BL = _prep_operands(x_nchw, w1, b1, w2, b2, wl, bl)

    vmem = pl.BlockSpec(memory_space=pltpu.MemorySpace.VMEM)
    r = pl.pallas_call(
        model_kernel,
        out_shape=jax.ShapeDtypeStruct((C2, NOUT), jnp.float32),
        in_specs=[vmem] * 7,
        out_specs=vmem,
    )(PT, W1T, B1, W2T, B2, BD, BL)

    # rows = c2, cols = (n, i2, o)  ->  (N, C2, H2, LIN_OUT)
    return r.reshape(C2, N, H2, LIN_OUT).transpose(1, 0, 2, 3)


def reference_forward(x, w1, b1, w2, b2, wl, bl):
    """Plain-JAX reference matching PyTorch semantics (NCHW, OIHW, VALID)."""
    dn = ("NCHW", "OIHW", "NCHW")
    y = jax.lax.conv_general_dilated(x, w1, (1, 1), "VALID", dimension_numbers=dn)
    y = jnp.maximum(y + b1[None, :, None, None], 0.0)
    y = jax.lax.conv_general_dilated(y, w2, (1, 1), "VALID", dimension_numbers=dn)
    y = jnp.maximum(y + b2[None, :, None, None], 0.0)
    s = jax.nn.sigmoid(y)
    return jnp.einsum("nchw,ow->ncho", s, wl) + bl


if __name__ == "__main__":
    key = jax.random.PRNGKey(0)
    ks = jax.random.split(key, 7)
    x = jax.random.normal(ks[0], (N, 1, H, W), jnp.float32)
    # Deterministic synthetic parameters (shapes per Module.__init__).
    w1 = jax.random.normal(ks[1], (C1, 1, K1, K1), jnp.float32) * 0.2
    b1 = jax.random.normal(ks[2], (C1,), jnp.float32) * 0.1
    w2 = jax.random.normal(ks[3], (C2, C1, K2, K2), jnp.float32) * 0.2
    b2 = jax.random.normal(ks[4], (C2,), jnp.float32) * 0.1
    wl = jax.random.normal(ks[5], (LIN_OUT, LIN_IN), jnp.float32) * 0.2
    bl = jax.random.normal(ks[6], (LIN_OUT,), jnp.float32) * 0.1

    out = model_forward(x, w1, b1, w2, b2, wl, bl)
    out = jax.block_until_ready(out)

    ref = reference_forward(x, w1, b1, w2, b2, wl, bl)
    assert out.shape == (N, C2, H2, LIN_OUT), out.shape
    max_err = float(jnp.max(jnp.abs(out - ref)))
    assert jnp.allclose(out, ref, atol=1e-4, rtol=1e-4), max_err

    print("KERNEL_OK")
</pallas_src>

<mosaic_0001>
module attributes {stable_mosaic.version = 11 : i64} {
  func.func @model_kernel(%arg0: memref<25x50xf32, #tpu.memory_space<vmem>>, %arg1: memref<36x25xf32, #tpu.memory_space<vmem>>, %arg2: memref<36x1xf32, #tpu.memory_space<vmem>>, %arg3: memref<9x36xf32, #tpu.memory_space<vmem>>, %arg4: memref<9x1xf32, #tpu.memory_space<vmem>>, %arg5: memref<50x40xf32, #tpu.memory_space<vmem>>, %arg6: memref<1x40xf32, #tpu.memory_space<vmem>>, %arg7: memref<9x40xf32, #tpu.memory_space<vmem>>) attributes {dimension_semantics = [], scalar_prefetch = 0 : i64, scratch_operands = 0 : i64, tpu.core_type = #tpu.core_type<tc>} {
    %c0 = arith.constant 0 : index
    %c0_0 = arith.constant 0 : index
    %0 = vector.load %arg0[%c0, %c0_0] : memref<25x50xf32, #tpu.memory_space<vmem>>, vector<25x50xf32>
    %c0_1 = arith.constant 0 : index
    %c0_2 = arith.constant 0 : index
    %1 = vector.load %arg1[%c0_1, %c0_2] : memref<36x25xf32, #tpu.memory_space<vmem>>, vector<36x25xf32>
    %cst = arith.constant dense<0.000000e+00> : vector<36x50xf32>
    %2 = tpu.matmul %1, %0, %cst {dimension_numbers = #tpu.dot_dimension_numbers<[1], [0], [0], [1], [0, 0, 1, 1], [], []>} : vector<36x25xf32>, vector<25x50xf32>, vector<36x50xf32> -> vector<36x50xf32>
    %c0_3 = arith.constant 0 : index
    %c0_4 = arith.constant 0 : index
    %3 = vector.load %arg2[%c0_3, %c0_4] : memref<36x1xf32, #tpu.memory_space<vmem>>, vector<36x1xf32>
    %4 = vector.broadcast %3 : vector<36x1xf32> to vector<36x50xf32>
    %5 = arith.addf %2, %4 : vector<36x50xf32>
    %cst_5 = arith.constant 0.000000e+00 : f32
    %6 = vector.broadcast %cst_5 : f32 to vector<36x50xf32>
    %7 = arith.maximumf %5, %6 : vector<36x50xf32>
    %c0_6 = arith.constant 0 : index
    %c0_7 = arith.constant 0 : index
    %8 = vector.load %arg3[%c0_6, %c0_7] : memref<9x36xf32, #tpu.memory_space<vmem>>, vector<9x36xf32>
    %cst_8 = arith.constant dense<0.000000e+00> : vector<9x50xf32>
    %9 = tpu.matmul %8, %7, %cst_8 {dimension_numbers = #tpu.dot_dimension_numbers<[1], [0], [0], [1], [0, 0, 1, 1], [], []>} : vector<9x36xf32>, vector<36x50xf32>, vector<9x50xf32> -> vector<9x50xf32>
    %c0_9 = arith.constant 0 : index
    %c0_10 = arith.constant 0 : index
    %10 = vector.load %arg4[%c0_9, %c0_10] : memref<9x1xf32, #tpu.memory_space<vmem>>, vector<9x1xf32>
    %11 = vector.broadcast %10 : vector<9x1xf32> to vector<9x50xf32>
    %12 = arith.addf %9, %11 : vector<9x50xf32>
    %cst_11 = arith.constant 0.000000e+00 : f32
    %13 = vector.broadcast %cst_11 : f32 to vector<9x50xf32>
    %14 = arith.maximumf %12, %13 : vector<9x50xf32>
    %cst_12 = arith.constant 0.000000e+00 : f32
    %15 = vector.broadcast %cst_12 : f32 to vector<9x50xf32>
    %16 = arith.subf %15, %14 : vector<9x50xf32>
    %17 = math.exp %16 : vector<9x50xf32>
    %cst_13 = arith.constant 1.000000e+00 : f32
    %18 = vector.broadcast %cst_13 : f32 to vector<9x50xf32>
    %19 = arith.addf %18, %17 : vector<9x50xf32>
    %cst_14 = arith.constant 1.000000e+00 : f32
    %20 = vector.broadcast %cst_14 : f32 to vector<9x50xf32>
    %21 = arith.divf %20, %19 : vector<9x50xf32>
    %c0_15 = arith.constant 0 : index
    %c0_16 = arith.constant 0 : index
    %22 = vector.load %arg5[%c0_15, %c0_16] : memref<50x40xf32, #tpu.memory_space<vmem>>, vector<50x40xf32>
    %cst_17 = arith.constant dense<0.000000e+00> : vector<9x40xf32>
    %23 = tpu.matmul %21, %22, %cst_17 {dimension_numbers = #tpu.dot_dimension_numbers<[1], [0], [0], [1], [0, 0, 1, 1], [], []>} : vector<9x50xf32>, vector<50x40xf32>, vector<9x40xf32> -> vector<9x40xf32>
    %c0_18 = arith.constant 0 : index
    %c0_19 = arith.constant 0 : index
    %24 = vector.load %arg6[%c0_18, %c0_19] : memref<1x40xf32, #tpu.memory_space<vmem>>, vector<1x40xf32>
    %25 = vector.broadcast %24 : vector<1x40xf32> to vector<9x40xf32>
    %26 = arith.addf %23, %25 : vector<9x40xf32>
    %c0_20 = arith.constant 0 : index
    %c0_21 = arith.constant 0 : index
    %27 = vector.load %arg7[%c0_20, %c0_21] : memref<9x40xf32, #tpu.memory_space<vmem>>, vector<9x40xf32>
    tpu.vector_store %arg7[%c0_20, %c0_21], %26 {strides = array<i32>} : memref<9x40xf32, #tpu.memory_space<vmem>>, vector<9x40xf32>,
    return
  }
}

</mosaic_0001>

<llo_original>
// kernel: tile.0
$region0: #{tile.0}
  %s0 = inlined_call_operand.vmem [shape: f32[9,4], index: 0, kind: input, shape index: {}]
  %s1 = inlined_call_operand.vmem [shape: f32[36,1], index: 1, kind: output, shape index: {}]
  %v2 = vld [vmem:[%s0] sm:$0xff]
  %vm3 = vcmask 7168
  %4 = vst.msk [vmem:[%s1] ss:$4 sm:$0xff] %vm3, %v2
  %s5 = scalar_lea.vmem %s0, 8
  %v6 = vld [vmem:[%s5] sm:$0x1]
  %vm7 = vcmask 7168
  %s8 = scalar_lea.vmem %s1, 32
  %9 = vst.msk [vmem:[%s8] sm:$0x1] %vm7, %v6
  %v10 = vld [vmem:[%s0] sm:$0xff]
  %11 = vrot.lane.b32.xlu0 %v10, 127
  %v12 = vpop.permute.xlu0 %11
  %vm13 = vcmask 7168
  %s14 = scalar_lea.vmem %s1, 1
  %15 = vst.msk [vmem:[%s14] ss:$4 sm:$0xff] %vm13, %v12
  %s16 = scalar_lea.vmem %s0, 8
  %v17 = vld [vmem:[%s16] sm:$0x1]
  %18 = vrot.lane.b32.xlu0 %v17, 127
  %v19 = vpop.permute.xlu0 %18
  %vm20 = vcmask 7168
  %s21 = scalar_lea.vmem %s1, 33
  %22 = vst.msk [vmem:[%s21] sm:$0x1] %vm20, %v19
  %v23 = vld [vmem:[%s0] sm:$0xff]
  %24 = vrot.lane.b32.xlu0 %v23, 126
  %v25 = vpop.permute.xlu0 %24
  %vm26 = vcmask 7168
  %s27 = scalar_lea.vmem %s1, 2
  %28 = vst.msk [vmem:[%s27] ss:$4 sm:$0xff] %vm26, %v25
  %s29 = scalar_lea.vmem %s0, 8
  %v30 = vld [vmem:[%s29] sm:$0x1]
  %31 = vrot.lane.b32.xlu0 %v30, 126
  %v32 = vpop.permute.xlu0 %31
  %vm33 = vcmask 7168
  %s34 = scalar_lea.vmem %s1, 34
  %35 = vst.msk [vmem:[%s34] sm:$0x1] %vm33, %v32
  %v36 = vld [vmem:[%s0] sm:$0xff]
  %37 = vrot.lane.b32.xlu0 %v36, 125
  %v38 = vpop.permute.xlu0 %37
  %vm39 = vcmask 7168
  %s40 = scalar_lea.vmem %s1, 3
  %41 = vst.msk [vmem:[%s40] ss:$4 sm:$0xff] %vm39, %v38
  %s42 = scalar_lea.vmem %s0, 8
  %v43 = vld [vmem:[%s42] sm:$0x1]
  %44 = vrot.lane.b32.xlu0 %v43, 125
  %v45 = vpop.permute.xlu0 %44
  %vm46 = vcmask 7168
  %s47 = scalar_lea.vmem %s1, 35
  %48 = vst.msk [vmem:[%s47] sm:$0x1] %vm46, %v45

// kernel: tile.13
$region0: #{tile.13}
  #allocation0 [shape = 's32[1]{0}', space=sflag, size = 0x4, scoped, tag = 'scoped memory for tile.13']
  %s0 = inlined_call_operand.vmem [shape: f32[4], index: 0, kind: input, shape index: {}]
  %s1 = inlined_call_operand.vmem [shape: f32[9,4], index: 1, kind: output, shape index: {}]
  // Predicated region
  $region2: #{tile.13} parent=0 // pred_check
    _
  $region3: #{tile.13} parent=0 // pred_check_branch
    %3 = sbr.rel (0) target = $region5
  $region4: #{tile.13} parent=0 // pred_region
    _
  $region5: #{tile.13} parent=0 // pred_fallthru
    _
  %v4 = vld [vmem:[%s0] ss:$0 sm:$0xff]
  %5 = vst [vmem:[%s1] sm:$0xff] %v4
  %s6 = scalar_lea.vmem %s1, 8
  %7 = vst [vmem:[%s6] sm:$0xff] %v4

// kernel: tile.18
$region0: #{tile.18}
  #allocation0 [shape = 's32[1]{0}', space=sflag, size = 0x4, scoped, tag = 'scoped memory for tile.18']
  %s0 = inlined_call_operand.vmem [shape: f32[4], index: 0, kind: input, shape index: {}]
  %s1 = inlined_call_operand.vmem [shape: f32[10,4], index: 1, kind: output, shape index: {}]
  // Predicated region
  $region2: #{tile.18} parent=0 // pred_check
    _
  $region3: #{tile.18} parent=0 // pred_check_branch
    %3 = sbr.rel (0) target = $region5
  $region4: #{tile.18} parent=0 // pred_region
    _
  $region5: #{tile.18} parent=0 // pred_fallthru
    _
  %v4 = vld [vmem:[%s0] ss:$0 sm:$0xff]
  %5 = vst [vmem:[%s1] sm:$0xff] %v4
  %s6 = scalar_lea.vmem %s1, 8
  %7 = vst [vmem:[%s6] sm:$0xff] %v4

// kernel: tile.19
$region0: #{tile.19}
  %s0 = inlined_call_operand.vmem [shape: f32[10,4], index: 0, kind: input, shape index: {}]
  %s1 = inlined_call_operand.vmem [shape: f32[1,40], index: 1, kind: output, shape index: {}]
  $region1: #{tile.19} parent=0
    #allocation0 [shape = 'u8[4096]{0}', space=vmem, size = 0x1000, scoped, tag = 'scoped mem for output reshape']
    %v2 = vld [vmem:[%s0] sm:$0x1]
    %vm3 = vcmask 31744
    %4 = vst.msk [vmem:[#allocation0] sm:$0x1] %vm3, %v2
    %s5 = scalar_lea.vmem %s0, 9
    %v6 = vld [vmem:[%s5] sm:$0x1]
    %7 = vrot.lane.b32.xlu0 %v6, 36
    %v8 = vpop.permute.xlu0 %7
    %vm9 = vcmask 326944
    %10 = vst.msk [vmem:[#allocation0] sm:$0x1] %vm9, %v8
    %s11 = scalar_lea.vmem %s0, 8
    %v12 = vld [vmem:[%s11] sm:$0x1]
    %13 = vrot.lane.b32.xlu0 %v12, 32
    %v14 = vpop.permute.xlu0 %13
    %vm15 = vcmask 294144
    %16 = vst.msk [vmem:[#allocation0] sm:$0x1] %vm15, %v14
    %s17 = scalar_lea.vmem %s0, 7
    %v18 = vld [vmem:[%s17] sm:$0x1]
    %19 = vrot.lane.b32.xlu0 %v18, 28
    %v20 = vpop.permute.xlu0 %19
    %vm21 = vcmask 261344
    %22 = vst.msk [vmem:[#allocation0] sm:$0x1] %vm21, %v20
    %s23 = scalar_lea.vmem %s0, 6
    %v24 = vld [vmem:[%s23] sm:$0x1]
    %25 = vrot.lane.b32.xlu0 %v24, 24
    %v26 = vpop.permute.xlu0 %25
    %vm27 = vcmask 228544
    %28 = vst.msk [vmem:[#allocation0] sm:$0x1] %vm27, %v26
    %s29 = scalar_lea.vmem %s0, 5
    %v30 = vld [vmem:[%s29] sm:$0x1]
    %31 = vrot.lane.b32.xlu0 %v30, 20
    %v32 = vpop.permute.xlu0 %31
    %vm33 = vcmask 195744
    %34 = vst.msk [vmem:[#allocation0] sm:$0x1] %vm33, %v32
    %s35 = scalar_lea.vmem %s0, 4
    %v36 = vld [vmem:[%s35] sm:$0x1]
    %37 = vrot.lane.b32.xlu0 %v36, 16
    %v38 = vpop.permute.xlu0 %37
    %vm39 = vcmask 162944
    %40 = vst.msk [vmem:[#allocation0] sm:$0x1] %vm39, %v38
    %s41 = scalar_lea.vmem %s0, 3
    %v42 = vld [vmem:[%s41] sm:$0x1]
    %43 = vrot.lane.b32.xlu0 %v42, 12
    %v44 = vpop.permute.xlu0 %43
    %vm45 = vcmask 130144
    %46 = vst.msk [vmem:[#allocation0] sm:$0x1] %vm45, %v44
    %s47 = scalar_lea.vmem %s0, 2
    %v48 = vld [vmem:[%s47] sm:$0x1]
    %49 = vrot.lane.b32.xlu0 %v48, 8
    %v50 = vpop.permute.xlu0 %49
    %vm51 = vcmask 97344
    %52 = vst.msk [vmem:[#allocation0] sm:$0x1] %vm51, %v50
    %s53 = scalar_lea.vmem %s0, 1
    %v54 = vld [vmem:[%s53] sm:$0x1]
    %55 = vrot.lane.b32.xlu0 %v54, 4
    %v56 = vpop.permute.xlu0 %55
    %vm57 = vcmask 64544
    %58 = vst.msk [vmem:[#allocation0] sm:$0x1] %vm57, %v56
    %s60 = ssub.s32 2, 1
    %v61 = vld [vmem:[#allocation0] sm:%s60]
    %s63 = ssub.s32 2, 1
    %64 = vst [vmem:[%s1] sm:%s63] %v61

// kernel: model_forward.1
$region0: #{model_forward.1}
  #allocation0 [shape = 'u32[]', space=smem, size = 0x4, offset = 0x4, fixed_abs, tag = 'smem constant byte address 0x4 - core index']
  #allocation1 [shape = 'u32[72,128]{1,0:T(1,128)}', space=vmem, size = 0x9000, scoped, tag = 'internal scratch']
  %s0 = inlined_call_operand.vmem [shape: f32[25,50], index: 0, kind: input, shape index: {}]
  %s1 = inlined_call_operand.vmem [shape: f32[36,25], index: 1, kind: input, shape index: {}]
  %s2 = inlined_call_operand.vmem [shape: f32[36,1], index: 2, kind: input, shape index: {}]
  %s3 = inlined_call_operand.vmem [shape: f32[9,36], index: 3, kind: input, shape index: {}]
  %s4 = inlined_call_operand.vmem [shape: f32[9,1], index: 4, kind: input, shape index: {}]
  %s5 = inlined_call_operand.vmem [shape: f32[50,40], index: 5, kind: input, shape index: {}]
  %s6 = inlined_call_operand.vmem [shape: f32[1,40], index: 6, kind: input, shape index: {}]
  %s7 = inlined_call_operand.vmem [shape: f32[9,40], index: 7, kind: output, shape index: {}]
  %s8 = sld [smem:[#allocation0]]
  $region38: #{model_forward.1} parent=0
    _
  %s10 = ssub.s32 1, %s8
  %s11 = scalar_select 0, %s10, %s8
  // Predicated region
  $region2: #{model_forward.1} parent=0 // pred_check
    _
  $region3: #{model_forward.1} parent=0 // pred_check_branch
    %13 = sbr.rel (0) target = $region5
  $region4: #{model_forward.1} parent=0 // pred_region
    _
  $region5: #{model_forward.1} parent=0 // pred_fallthru
    _
  // Predicated region
  $region6: #{model_forward.1} parent=0 // pred_check
    _
  $region7: #{model_forward.1} parent=0 // pred_check_branch
    %15 = sbr.rel (0) target = $region9
  $region8: #{model_forward.1} parent=0 // pred_region
    _
  $region9: #{model_forward.1} parent=0 // pred_fallthru
    _
  // Predicated region
  $region10: #{model_forward.1} parent=0 // pred_check
    _
  $region11: #{model_forward.1} parent=0 // pred_check_branch
    %17 = sbr.rel (0) target = $region13
  $region12: #{model_forward.1} parent=0 // pred_region
    _
  $region13: #{model_forward.1} parent=0 // pred_fallthru
    _
  // Predicated region
  $region14: #{model_forward.1} parent=0 // pred_check
    _
  $region15: #{model_forward.1} parent=0 // pred_check_branch
    %19 = sbr.rel (0) target = $region17
  $region16: #{model_forward.1} parent=0 // pred_region
    _
  $region17: #{model_forward.1} parent=0 // pred_fallthru
    _
  // Predicated region
  $region18: #{model_forward.1} parent=0 // pred_check
    _
  $region19: #{model_forward.1} parent=0 // pred_check_branch
    %21 = sbr.rel (0) target = $region21
  $region20: #{model_forward.1} parent=0 // pred_region
    _
  $region21: #{model_forward.1} parent=0 // pred_fallthru
    _
  // Predicated region
  $region22: #{model_forward.1} parent=0 // pred_check
    _
  $region23: #{model_forward.1} parent=0 // pred_check_branch
    %23 = sbr.rel (0) target = $region25
  $region24: #{model_forward.1} parent=0 // pred_region
    _
  $region25: #{model_forward.1} parent=0 // pred_fallthru
    _
  // Predicated region
  $region26: #{model_forward.1} parent=0 // pred_check
    _
  $region27: #{model_forward.1} parent=0 // pred_check_branch
    %25 = sbr.rel (0) target = $region29
  $region28: #{model_forward.1} parent=0 // pred_region
    _
  $region29: #{model_forward.1} parent=0 // pred_fallthru
    _
  %v26 = vld [vmem:[%s0] sm:$0xff]
  %v27 = vld [vmem:[%s0 + $0x8] sm:$0xff]
  %v28 = vld [vmem:[%s0 + $0x10] sm:$0xff]
  %v29 = vld [vmem:[%s0 + $0x18] sm:$0x1]
  %v30 = vld [vmem:[%s1] sm:$0xff]
  %v31 = vld [vmem:[%s1 + $0x8] sm:$0xff]
  %v32 = vld [vmem:[%s1 + $0x10] sm:$0xff]
  %v33 = vld [vmem:[%s1 + $0x18] sm:$0xff]
  %v34 = vld [vmem:[%s1 + $0x20] sm:$0xf]
  %v35 = vld [vmem:[%s2] sm:$0xff]
  %v36 = vld [vmem:[%s2 + $0x8] sm:$0xff]
  %v37 = vld [vmem:[%s2 + $0x10] sm:$0xff]
  %v38 = vld [vmem:[%s2 + $0x18] sm:$0xff]
  %v39 = vld [vmem:[%s2 + $0x20] sm:$0xf]
  %41 = vset.pattern.permute.xlu0 0
  %42 = vperm.xlu0 %41, %v35
  %v43 = vpop.permute.xlu0 %42
  %46 = vset.pattern.permute.xlu0 0
  %47 = vperm.xlu0 %46, %v36
  %v48 = vpop.permute.xlu0 %47
  %51 = vset.pattern.permute.xlu0 0
  %52 = vperm.xlu0 %51, %v37
  %v53 = vpop.permute.xlu0 %52
  %56 = vset.pattern.permute.xlu0 0
  %57 = vperm.xlu0 %56, %v38
  %v58 = vpop.permute.xlu0 %57
  %61 = vset.pattern.permute.xlu0 0
  %62 = vperm.xlu0 %61, %v39
  %v63 = vpop.permute.xlu0 %62
  %vm65 = vcmask 203776
  %v67 = vsel %vm65, %v30, 0
  %v70 = vsel %vm65, %v31, 0
  %v73 = vsel %vm65, %v32, 0
  %v76 = vsel %vm65, %v33, 0
  %v79 = vsel %vm65, %v34, 0
  %vm81 = vcmask 1040384
  %v83 = vsel %vm81, %v29, 0
  %85 = vmatpush.msra.mxu0 0.0
  %86 = vmatpush.msra.mxu0 0.0
  %87 = vmatpush.msra.mxu0 0.0
  %88 = vmatpush.msra.mxu0 0.0
  %89 = vmatpush.msra.mxu0 0.0
  %90 = vmatpush.msra.mxu0 0.0
  %91 = vmatpush.msra.mxu0 0.0
  %92 = vmatpush.msra.mxu0 0.0
  %93 = vmatpush.msra.mxu0 0.0
  %94 = vmatpush.msra.mxu0 0.0
  %95 = vmatpush.msra.mxu0 0.0
  %96 = vmatpush.msra.mxu0 0.0
  %97 = vmatpush.msra.mxu0 %v83
  %98 = vmatpush.msra.mxu0 %v28
  %99 = vmatpush.msra.mxu0 %v27
  %100 = vmatpush.msra.mxu0 %v26
  %101 = vmatmul.f32.gmra.mxu0 %v67
  %v102 = vpop.f32.mrf.mxu0
  %v103 = vadd.f32 %v43, %v102
  %104 = vmatmul.f32.gmra.mxu0 %v70
  %v105 = vpop.f32.mrf.mxu0
  %v106 = vadd.f32 %v48, %v105
  %107 = vmatmul.f32.gmra.mxu0 %v73
  %v108 = vpop.f32.mrf.mxu0
  %v109 = vadd.f32 %v53, %v108
  %110 = vmatmul.f32.gmra.mxu0 %v76
  %v111 = vpop.f32.mrf.mxu0
  %v112 = vadd.f32 %v58, %v111
  %113 = vmatmul.f32.gmra.mxu0 %v79
  %v114 = vpop.f32.mrf.mxu0
  %v115 = vadd.f32 %v63, %v114
  %116 = vdwg.mxu0
  %v117 = vmax.f32 %v103, 0.0
  %v118 = vmax.f32 %v106, 0.0
  %v119 = vmax.f32 %v109, 0.0
  %v120 = vmax.f32 %v112, 0.0
  %v121 = vmax.f32 %v115, 0.0
  %v122 = vld [vmem:[%s3] sm:$0xff]
  %v123 = vld [vmem:[%s3 + $0x8] sm:$0x1]
  %v124 = vld [vmem:[%s4] sm:$0xff]
  %v125 = vld [vmem:[%s4 + $0x8] sm:$0x1]
  %127 = vset.pattern.permute.xlu0 0
  %128 = vperm.xlu0 %127, %v124
  %v129 = vpop.permute.xlu0 %128
  %132 = vset.pattern.permute.xlu0 0
  %133 = vperm.xlu0 %132, %v125
  %v134 = vpop.permute.xlu0 %133
  %vm136 = vcmask 293888
  %v138 = vsel %vm136, %v122, 0
  %v141 = vsel %vm136, %v123, 0
  %vm143 = vcmask 1043456
  %v145 = vsel %vm143, %v121, 0
  %147 = vmatpush.msra.mxu0 0.0
  %148 = vmatpush.msra.mxu0 0.0
  %149 = vmatpush.msra.mxu0 0.0
  %150 = vmatpush.msra.mxu0 0.0
  %151 = vmatpush.msra.mxu0 0.0
  %152 = vmatpush.msra.mxu0 0.0
  %153 = vmatpush.msra.mxu0 0.0
  %154 = vmatpush.msra.mxu0 0.0
  %155 = vmatpush.msra.mxu0 0.0
  %156 = vmatpush.msra.mxu0 0.0
  %157 = vmatpush.msra.mxu0 0.0
  %158 = vmatpush.msra.mxu0 %v145
  %159 = vmatpush.msra.mxu0 %v120
  %160 = vmatpush.msra.mxu0 %v119
  %161 = vmatpush.msra.mxu0 %v118
  %162 = vmatpush.msra.mxu0 %v117
  %163 = vmatmul.f32.gmra.mxu0 %v138
  %v164 = vpop.f32.mrf.mxu0
  %v165 = vadd.f32 %v129, %v164
  %166 = vmatmul.f32.gmra.mxu0 %v141
  %v167 = vpop.f32.mrf.mxu0
  %v168 = vadd.f32 %v134, %v167
  %169 = vdwg.mxu0
  %v170 = vmax.f32 %v165, 0.0
  %v171 = vmax.f32 %v168, 0.0
  %v172 = vsub.f32 0.0, %v170
  %v173 = vsub.f32 0.0, %v171
  %v174 = vmul.f32 %v172, 1.442695
  %v175 = vpow.pop %v174
  %v176 = vmul.f32 %v173, 1.442695
  %v177 = vpow.pop %v176
  %v178 = vadd.f32 %v175, 1.0
  %v179 = vadd.f32 %v177, 1.0
  %v180 = vrcp.pop %v178
  %v181 = vmul.f32 %v178, %v180
  %v182 = vsub.f32 1.0, %v181
  %v183 = vmul.f32 %v180, %v182
  %v184 = vadd.f32 %v180, %v183
  %vm185 = vweird.f32 %v178
  %vm186 = vweird.f32 %v180
  %vm187 = vmor %vm185, %vm186
  %v188 = vsel %vm187, %v180, %v184
  %v189 = vand.u32 2147483647, %v178
  %vm190 = vcmp.eq.f32.partialorder %v189, 8.507059e+37
  %v191 = vand.u32 %v178, 2147483648
  %v192 = vor.u32 1.1754944e-38, %v191
  %v193 = vsel %vm190, %v192, %v188
  %v194 = vmul.f32 1.0, %v193
  %v195 = vrcp.pop %v179
  %v196 = vmul.f32 %v179, %v195
  %v197 = vsub.f32 1.0, %v196
  %v198 = vmul.f32 %v195, %v197
  %v199 = vadd.f32 %v195, %v198
  %vm200 = vweird.f32 %v179
  %vm201 = vweird.f32 %v195
  %vm202 = vmor %vm200, %vm201
  %v203 = vsel %vm202, %v195, %v199
  %v204 = vand.u32 2147483647, %v179
  %vm205 = vcmp.eq.f32.partialorder %v204, 8.507059e+37
  %v206 = vand.u32 %v179, 2147483648
  %v207 = vor.u32 1.1754944e-38, %v206
  %v208 = vsel %vm205, %v207, %v203
  %v209 = vmul.f32 1.0, %v208
  %v210 = vld [vmem:[%s5] sm:$0xff]
  %v211 = vld [vmem:[%s5 + $0x8] sm:$0xff]
  %v212 = vld [vmem:[%s5 + $0x10] sm:$0xff]
  %v213 = vld [vmem:[%s5 + $0x18] sm:$0xff]
  %v214 = vld [vmem:[%s5 + $0x20] sm:$0xff]
  %v215 = vld [vmem:[%s5 + $0x28] sm:$0xff]
  %v216 = vld [vmem:[%s5 + $0x30] sm:$0x3]
  %v217 = vld [vmem:[%s6] sm:$0x1]
  %v219 = vperm.slane %v217, 0
  %vm221 = vcmask 408576
  %v223 = vsel %vm221, %v194, 0
  %v226 = vsel %vm221, %v209, 0
  %vm228 = vcmask 1041408
  %v230 = vsel %vm228, %v216, 0
  %232 = vmatpush.msra.mxu0 0.0
  %233 = vmatpush.msra.mxu0 0.0
  %234 = vmatpush.msra.mxu0 0.0
  %235 = vmatpush.msra.mxu0 0.0
  %236 = vmatpush.msra.mxu0 0.0
  %237 = vmatpush.msra.mxu0 0.0
  %238 = vmatpush.msra.mxu0 0.0
  %239 = vmatpush.msra.mxu0 0.0
  %240 = vmatpush.msra.mxu0 0.0
  %241 = vmatpush.msra.mxu0 %v230
  %242 = vmatpush.msra.mxu0 %v215
  %243 = vmatpush.msra.mxu0 %v214
  %244 = vmatpush.msra.mxu0 %v213
  %245 = vmatpush.msra.mxu0 %v212
  %246 = vmatpush.msra.mxu0 %v211
  %247 = vmatpush.msra.mxu0 %v210
  %248 = vmatmul.f32.gmra.mxu0 %v223
  %v249 = vpop.f32.mrf.mxu0
  %v250 = vadd.f32 %v219, %v249
  %251 = vmatmul.f32.gmra.mxu0 %v226
  %v252 = vpop.f32.mrf.mxu0
  %v253 = vadd.f32 %v219, %v252
  %254 = vdwg.mxu0
  %vm255 = vcmask 326656
  %256 = vst.msk [vmem:[%s7] sm:$0xff] %vm255, %v250
  %vm257 = vcmask 319488
  %258 = vst.msk [vmem:[%s7 + $0x8] sm:$0x1] %vm257, %v253
  // Predicated region
  $region30: #{model_forward.1} parent=0 // pred_check
    _
  $region31: #{model_forward.1} parent=0 // pred_check_branch
    %260 = sbr.rel (0) target = $region33
  $region32: #{model_forward.1} parent=0 // pred_region
    _
  $region33: #{model_forward.1} parent=0 // pred_fallthru
    _
  // Predicated region
  $region34: #{model_forward.1} parent=0 // pred_check
    _
  $region35: #{model_forward.1} parent=0 // pred_check_branch
    %262 = sbr.rel (0) target = $region37
  $region36: #{model_forward.1} parent=0 // pred_region
    _
  $region37: #{model_forward.1} parent=0 // pred_fallthru
    _

</llo_original>
